<compile_context>
chip_gen: v7x
topology: tpu7x:2x2x1
jax: 0.10.0
libtpu: 0.0.40
codegen_flags: <defaults>
</compile_context>

<pallas_src>
import jax
import jax.numpy as jnp
from jax.experimental import pallas as pl
from jax.experimental.pallas import tpu as pltpu

HIDDEN = 50                  # H
H_PAD = 56                   # per-gate sublane-aligned slot (multiple of 8)
INPUT_SIZE = 2

# Resident weight-slab row layout (all offsets are multiples of 8).
WX_OFF = 0 * H_PAD           # w_ih[:, x-column], gates [i, o, g]
WT_OFF = 3 * H_PAD           # w_ih[:, t-column], gates [i, o, g]
B_OFF = 6 * H_PAD            # b_ih + b_hh,       gates [i, o, g]
FC_OFF = 9 * H_PAD           # fc weight row (zero-padded to H_PAD)
BFC_OFF = 10 * H_PAD         # fc bias (one row)
SLAB_ROWS = 10 * H_PAD + 8   # pad total rows to a multiple of 8


def _pick_tn(n):
    """Lane tile along the batch: big enough to amortize per-step overhead,
    small enough that the grid has >= 2 steps for modest batches (v7x)."""
    if n > 8192:
        return 1024
    if n > 1024:
        return 512
    if n > 256:
        return 256
    return 128


def _lstm_pinn_kernel(xt_ref, w_ref, out_ref):
    # xt_ref : (2, TN)          row 0 = x, row 1 = t  (lane-dense batch)
    # w_ref  : (SLAB_ROWS, TN)  resident, pre-broadcast weights/biases
    # out_ref: (1, TN)
    x = xt_ref[0:1, :]
    t = xt_ref[1:2, :]

    def pre(g):
        """Gate pre-activation as one fused (H_PAD, TN) chain (no gates slab)."""
        o = g * H_PAD
        return (w_ref[WX_OFF + o:WX_OFF + o + H_PAD, :] * x
                + w_ref[WT_OFF + o:WT_OFF + o + H_PAD, :] * t
                + w_ref[B_OFF + o:B_OFF + o + H_PAD, :])

    def sigm(z):
        """Single-EUP-op sigmoid: sigmoid(z) = 0.5*(1 + tanh(z/2))."""
        return 0.5 * (1.0 + jnp.tanh(0.5 * z))

    # Gate slots in the slab are ordered [i, o, g].
    i_g = sigm(pre(0))                         # input gate
    g_g = jnp.tanh(pre(2))                     # cell candidate
    ct = jnp.tanh(i_g * g_g)                   # c0 = 0 -> c = i*g (f-gate dead)
    o_g = sigm(pre(1))                         # output gate
    h = o_g * ct                               # (H_PAD, TN); padded rows == 0

    # fc head: weighted sublane (XLU) reduction; padded w_fc rows are zero.
    w_fc = w_ref[FC_OFF:FC_OFF + H_PAD, :]
    b_fc = w_ref[BFC_OFF:BFC_OFF + 1, :]
    out_ref[...] = jnp.sum(w_fc * h, axis=0, keepdims=True) + b_fc


def _gate_cols(v, h=HIDDEN, h_pad=H_PAD):
    """PyTorch gate order [i, f, g, o] (4h, k) -> padded [i, o, g] (3*h_pad, k)."""
    v = jnp.asarray(v, jnp.float32)
    if v.ndim == 1:
        v = v.reshape(-1, 1)
    k = v.shape[1]
    v = v.reshape(4, h, k)
    sel = v[jnp.array([0, 3, 2])]                       # [i, o, g]
    pad = jnp.zeros((3, h_pad - h, k), jnp.float32)
    return jnp.concatenate([sel, pad], axis=1).reshape(3 * h_pad, k)


def _build_weight_slab(params, tn):
    """Pack all weights/biases into one lane-pre-broadcast (SLAB_ROWS, tn) slab."""
    w_ih = jnp.asarray(params["w_ih"], jnp.float32)     # (4H, 2)
    w_x = _gate_cols(w_ih[:, 0:1])                      # (3*H_PAD, 1)
    w_t = _gate_cols(w_ih[:, 1:2])                      # (3*H_PAD, 1)
    b = _gate_cols(jnp.asarray(params["b_ih"], jnp.float32)
                   + jnp.asarray(params["b_hh"], jnp.float32))
    w_fc = jnp.concatenate(
        [jnp.asarray(params["w_fc"], jnp.float32).reshape(HIDDEN, 1),
         jnp.zeros((H_PAD - HIDDEN, 1), jnp.float32)], axis=0)
    b_fc = jnp.asarray(params["b_fc"], jnp.float32).reshape(1, 1)
    filler = jnp.zeros((SLAB_ROWS - (10 * H_PAD + 1), 1), jnp.float32)
    cols = jnp.concatenate([w_x, w_t, b, w_fc, b_fc, filler], axis=0)
    # Lane pre-broadcast once in the wrapper (never re-done per grid step).
    return jnp.broadcast_to(cols, (SLAB_ROWS, tn))


def lstm_pinn_forward(x, t, params):
    """x, t: (N, 1) float32.  Returns (N, 1) float32."""
    n = x.shape[0]
    tn = _pick_tn(n)
    n_pad = tn * pl.cdiv(n, tn)

    # One (2, n_pad) input array -> a single per-step DMA.
    xt = jnp.concatenate(
        [jnp.asarray(x, jnp.float32).reshape(1, -1),
         jnp.asarray(t, jnp.float32).reshape(1, -1)], axis=0)
    xt = jnp.pad(xt, ((0, 0), (0, n_pad - n)))

    w_slab = _build_weight_slab(params, tn)

    out_row = pl.pallas_call(
        _lstm_pinn_kernel,
        out_shape=jax.ShapeDtypeStruct((1, n_pad), jnp.float32),
        grid=(n_pad // tn,),
        in_specs=[
            pl.BlockSpec((2, tn), lambda i: (0, i)),            # x/t tile
            pl.BlockSpec((SLAB_ROWS, tn), lambda i: (0, 0)),    # resident weights
        ],
        out_specs=pl.BlockSpec((1, tn), lambda i: (0, i)),
        compiler_params=pltpu.CompilerParams(
            dimension_semantics=("parallel",)),
    )(xt, w_slab)

    return out_row.reshape(-1)[:n].reshape(n, 1)


def init_params(key, hidden=HIDDEN, input_size=INPUT_SIZE):
    """Deterministic init mirroring PyTorch's U(-1/sqrt(H), 1/sqrt(H))."""
    ks = jax.random.split(key, 6)
    bound = 1.0 / jnp.sqrt(jnp.float32(hidden))
    u = lambda k, shape: jax.random.uniform(
        k, shape, jnp.float32, minval=-bound, maxval=bound)
    return {
        "w_ih": u(ks[0], (4 * hidden, input_size)),  # PyTorch weight_ih_l0
        "b_ih": u(ks[1], (4 * hidden,)),
        "w_hh": u(ks[2], (4 * hidden, hidden)),      # unused (h0 = 0), kept for parity
        "b_hh": u(ks[3], (4 * hidden,)),
        "w_fc": u(ks[4], (1, hidden)),               # PyTorch fc.weight
        "b_fc": u(ks[5], (1,)),
    }


def _reference(x, t, p):
    """Pure-JAX replica of the PyTorch forward pass (standard [i,f,g,o] order)."""
    h = HIDDEN
    xt = jnp.concatenate([x, t], axis=-1)
    gates = xt @ p["w_ih"].T + p["b_ih"] + p["b_hh"]
    i_g = jax.nn.sigmoid(gates[:, 0 * h:1 * h])
    f_g = jax.nn.sigmoid(gates[:, 1 * h:2 * h])
    g_g = jnp.tanh(gates[:, 2 * h:3 * h])
    o_g = jax.nn.sigmoid(gates[:, 3 * h:4 * h])
    c = f_g * 0.0 + i_g * g_g                        # c0 = 0
    hh = o_g * jnp.tanh(c)
    return hh @ p["w_fc"].T + p["b_fc"]


if __name__ == "__main__":
    key = jax.random.PRNGKey(0)
    k_p, k_x, k_t = jax.random.split(key, 3)

    N = 1000  # collocation points (not a multiple of TN; grid has 4 steps)
    params = init_params(k_p)
    x = jax.random.uniform(k_x, (N, 1), jnp.float32, minval=-1.0, maxval=1.0)
    t = jax.random.uniform(k_t, (N, 1), jnp.float32, minval=0.0, maxval=1.0)

    y = jax.block_until_ready(lstm_pinn_forward(x, t, params))
    y_ref = _reference(x, t, params)

    assert y.shape == (N, 1)
    assert jnp.allclose(y, y_ref, atol=2e-5, rtol=1e-5), "mismatch vs reference"
    print("KERNEL_OK")
</pallas_src>

<mosaic_0001>
module attributes {stable_mosaic.version = 11 : i64} {
  func.func @_lstm_pinn_kernel(%arg0: i32, %arg1: memref<2x256xf32, #tpu.memory_space<vmem>>, %arg2: memref<568x256xf32, #tpu.memory_space<vmem>>, %arg3: memref<1x256xf32, #tpu.memory_space<vmem>>) attributes {dimension_semantics = [#tpu.dimension_semantics<parallel>], iteration_bounds = array<i64: 4>, scalar_prefetch = 0 : i64, scratch_operands = 0 : i64, tpu.core_type = #tpu.core_type<tc>, window_params = [{transform_indices = @transform_0, window_bounds = array<i64: 2, 256>}, {pipeline_mode = #tpu.pipeline_mode<synchronous>, transform_indices = @transform_1, window_bounds = array<i64: 568, 256>}, {transform_indices = @transform_2, window_bounds = array<i64: 1, 256>}]} {
    %c0 = arith.constant 0 : index
    %c0_0 = arith.constant 0 : index
    %0 = vector.load %arg1[%c0, %c0_0] : memref<2x256xf32, #tpu.memory_space<vmem>>, vector<1x256xf32>
    %c1 = arith.constant 1 : index
    %c0_1 = arith.constant 0 : index
    %1 = vector.load %arg1[%c1, %c0_1] : memref<2x256xf32, #tpu.memory_space<vmem>>, vector<1x256xf32>
    %c0_2 = arith.constant 0 : index
    %c0_3 = arith.constant 0 : index
    %2 = vector.load %arg2[%c0_2, %c0_3] : memref<568x256xf32, #tpu.memory_space<vmem>>, vector<56x256xf32>
    %3 = vector.broadcast %0 : vector<1x256xf32> to vector<56x256xf32>
    %4 = arith.mulf %2, %3 : vector<56x256xf32>
    %c168 = arith.constant 168 : index
    %c0_4 = arith.constant 0 : index
    %5 = vector.load %arg2[%c168, %c0_4] : memref<568x256xf32, #tpu.memory_space<vmem>>, vector<56x256xf32>
    %6 = vector.broadcast %1 : vector<1x256xf32> to vector<56x256xf32>
    %7 = arith.mulf %5, %6 : vector<56x256xf32>
    %8 = arith.addf %4, %7 : vector<56x256xf32>
    %c336 = arith.constant 336 : index
    %c0_5 = arith.constant 0 : index
    %9 = vector.load %arg2[%c336, %c0_5] : memref<568x256xf32, #tpu.memory_space<vmem>>, vector<56x256xf32>
    %10 = arith.addf %8, %9 : vector<56x256xf32>
    %cst = arith.constant 5.000000e-01 : f32
    %11 = vector.broadcast %cst : f32 to vector<56x256xf32>
    %12 = arith.mulf %11, %10 : vector<56x256xf32>
    %13 = math.tanh %12 : vector<56x256xf32>
    %cst_6 = arith.constant 1.000000e+00 : f32
    %14 = vector.broadcast %cst_6 : f32 to vector<56x256xf32>
    %15 = arith.addf %14, %13 : vector<56x256xf32>
    %cst_7 = arith.constant 5.000000e-01 : f32
    %16 = vector.broadcast %cst_7 : f32 to vector<56x256xf32>
    %17 = arith.mulf %16, %15 : vector<56x256xf32>
    %c112 = arith.constant 112 : index
    %c0_8 = arith.constant 0 : index
    %18 = vector.load %arg2[%c112, %c0_8] : memref<568x256xf32, #tpu.memory_space<vmem>>, vector<56x256xf32>
    %19 = vector.broadcast %0 : vector<1x256xf32> to vector<56x256xf32>
    %20 = arith.mulf %18, %19 : vector<56x256xf32>
    %c280 = arith.constant 280 : index
    %c0_9 = arith.constant 0 : index
    %21 = vector.load %arg2[%c280, %c0_9] : memref<568x256xf32, #tpu.memory_space<vmem>>, vector<56x256xf32>
    %22 = vector.broadcast %1 : vector<1x256xf32> to vector<56x256xf32>
    %23 = arith.mulf %21, %22 : vector<56x256xf32>
    %24 = arith.addf %20, %23 : vector<56x256xf32>
    %c448 = arith.constant 448 : index
    %c0_10 = arith.constant 0 : index
    %25 = vector.load %arg2[%c448, %c0_10] : memref<568x256xf32, #tpu.memory_space<vmem>>, vector<56x256xf32>
    %26 = arith.addf %24, %25 : vector<56x256xf32>
    %27 = math.tanh %26 : vector<56x256xf32>
    %28 = arith.mulf %17, %27 : vector<56x256xf32>
    %29 = math.tanh %28 : vector<56x256xf32>
    %c56 = arith.constant 56 : index
    %c0_11 = arith.constant 0 : index
    %30 = vector.load %arg2[%c56, %c0_11] : memref<568x256xf32, #tpu.memory_space<vmem>>, vector<56x256xf32>
    %31 = vector.broadcast %0 : vector<1x256xf32> to vector<56x256xf32>
    %32 = arith.mulf %30, %31 : vector<56x256xf32>
    %c224 = arith.constant 224 : index
    %c0_12 = arith.constant 0 : index
    %33 = vector.load %arg2[%c224, %c0_12] : memref<568x256xf32, #tpu.memory_space<vmem>>, vector<56x256xf32>
    %34 = vector.broadcast %1 : vector<1x256xf32> to vector<56x256xf32>
    %35 = arith.mulf %33, %34 : vector<56x256xf32>
    %36 = arith.addf %32, %35 : vector<56x256xf32>
    %c392 = arith.constant 392 : index
    %c0_13 = arith.constant 0 : index
    %37 = vector.load %arg2[%c392, %c0_13] : memref<568x256xf32, #tpu.memory_space<vmem>>, vector<56x256xf32>
    %38 = arith.addf %36, %37 : vector<56x256xf32>
    %cst_14 = arith.constant 5.000000e-01 : f32
    %39 = vector.broadcast %cst_14 : f32 to vector<56x256xf32>
    %40 = arith.mulf %39, %38 : vector<56x256xf32>
    %41 = math.tanh %40 : vector<56x256xf32>
    %cst_15 = arith.constant 1.000000e+00 : f32
    %42 = vector.broadcast %cst_15 : f32 to vector<56x256xf32>
    %43 = arith.addf %42, %41 : vector<56x256xf32>
    %cst_16 = arith.constant 5.000000e-01 : f32
    %44 = vector.broadcast %cst_16 : f32 to vector<56x256xf32>
    %45 = arith.mulf %44, %43 : vector<56x256xf32>
    %46 = arith.mulf %45, %29 : vector<56x256xf32>
    %c504 = arith.constant 504 : index
    %c0_17 = arith.constant 0 : index
    %47 = vector.load %arg2[%c504, %c0_17] : memref<568x256xf32, #tpu.memory_space<vmem>>, vector<56x256xf32>
    %c560 = arith.constant 560 : index
    %c0_18 = arith.constant 0 : index
    %48 = vector.load %arg2[%c560, %c0_18] : memref<568x256xf32, #tpu.memory_space<vmem>>, vector<1x256xf32>
    %49 = arith.mulf %47, %46 : vector<56x256xf32>
    %cst_19 = arith.constant dense<0.000000e+00> : vector<256xf32>
    %50 = vector.multi_reduction <add>, %49, %cst_19 [0] : vector<56x256xf32> to vector<256xf32>
    %51 = vector.shape_cast %50 : vector<256xf32> to vector<1x256xf32>
    %52 = arith.addf %51, %48 : vector<1x256xf32>
    %c0_20 = arith.constant 0 : index
    %c0_21 = arith.constant 0 : index
    %53 = vector.load %arg3[%c0_20, %c0_21] : memref<1x256xf32, #tpu.memory_space<vmem>>, vector<1x256xf32>
    tpu.vector_store %arg3[%c0_20, %c0_21], %52 {strides = array<i32>} : memref<1x256xf32, #tpu.memory_space<vmem>>, vector<1x256xf32>,
    return
  }
  func.func @transform_0(%arg0: i32) -> (i32, i32) {
    %c0_i32 = arith.constant 0 : i32
    %c0_i32_0 = arith.constant 0 : i32
    return %c0_i32, %arg0 : i32, i32
  }
  func.func @transform_1(%arg0: i32) -> (i32, i32) {
    %c0_i32 = arith.constant 0 : i32
    %c0_i32_0 = arith.constant 0 : i32
    %c0_i32_1 = arith.constant 0 : i32
    return %c0_i32, %c0_i32_0 : i32, i32
  }
  func.func @transform_2(%arg0: i32) -> (i32, i32) {
    %c0_i32 = arith.constant 0 : i32
    %c0_i32_0 = arith.constant 0 : i32
    return %c0_i32, %arg0 : i32, i32
  }
}

</mosaic_0001>

<llo_original>
// kernel: tpu_custom_call.1
$region0: #{tpu_custom_call.1}
  #allocation0 [shape = 'u32[]', space=smem, size = 0x4, offset = 0x4, fixed_abs, tag = 'smem constant byte address 0x4 - core index']
  #allocation1 [shape = 'u32[144,128]{1,0:T(1,128)}', space=vmem, size = 0x12000, scoped, tag = 'internal scratch']
  %s0 = inlined_call_operand.hbm [shape: f32[2,1024], index: 0, kind: input, shape index: {}]
  %s1 = inlined_call_operand.hbm [shape: f32[568,256], index: 1, kind: input, shape index: {}]
  %s2 = inlined_call_operand.hbm [shape: f32[1,1024], index: 2, kind: output, shape index: {}]
  %s3 = sld [smem:[#allocation0]]
  $region49: #{tpu_custom_call.1} parent=0
    _
  %s5 = ssub.s32 1, %s3
  %s6 = scalar_select 0, %s5, %s3
  $region1: #{tpu_custom_call.1} parent=0
    #allocation2 [shape = 'u8[4096]{0}', space=vmem, size = 0x1000, scoped, tag = 'input window, operand 0']
    #allocation3 [shape = 's32[2]{0}', space=sflag, size = 0x8, scoped, tag = 'scoped memory for tpu_custom_call.1']
    #allocation4 [shape = 's32[2]{0}', space=sflag, size = 0x8, scoped, tag = 'scoped memory for tpu_custom_call.1']
    #allocation5 [shape = 'u8[581632]{0}', space=vmem, size = 0x8e000, scoped, tag = 'input window, operand 1, single buffered']
    #allocation6 [shape = 's32[1]{0}', space=sflag, size = 0x4, scoped, tag = 'scoped memory for tpu_custom_call.1']
    #allocation7 [shape = 'u8[2048]{0}', space=vmem, size = 0x800, scoped, tag = 'output window, operand 0']
    %7 = vsyncpa [#allocation3], 0
    %s8 = scalar_lea.sflag [#allocation3], 1
    %9 = vsyncpa %s8, 0
    %10 = vsyncpa [#allocation6], 0
    %11 = vsyncpa [#allocation4], 0
    %s12 = scalar_lea.sflag [#allocation4], 1
    %13 = vsyncpa %s12, 0
    loop: start=0, step=1, limit=6
    $region2: #{tpu_custom_call.1} parent=1 // loop_pre_header
      _
    $region3: #{tpu_custom_call.1} parent=1 // loop_header
      %s15 = sphi 0, %s19
      %p16 = scmp.ge.s32.totalorder %s15, 6
      %s25 = sphi 0, %s27
      %s28 = sphi 0, %s25
      %s29 = sphi 0, %s28
      %s45 = sphi 0, %s29
      %s49 = sphi 0, %s49
      %s51 = sphi 0, %s49
      %s52 = sphi 0, %s51
      %s66 = sphi 0, %s52
      %s72 = sphi 0, %s74
      %s75 = sphi 0, %s72
      %s76 = sphi 0, %s75
      %s92 = sphi 0, %s76
    $region4: #{tpu_custom_call.1} parent=1 // loop_header_branch
      %18 = sbr.rel (%p16) target = $region8
    $region5: #{tpu_custom_call.1} parent=1 // loop_body
      %s20 = ssub.s32 %s15, 1
      %s21 = ssub.s32 %s15, 2
      %s22 = sadd.s32 %s15, 1
      %s23 = ssub.s32 %s15, %s22
      %p24 = scmp.eq.s32.totalorder %s23, 0
      %s26 = sadd.s32 %s25, 1
      %s27 = scalar_select %p24, %s25, %s26
      %p30 = pneg %p24
      %p31 = scmp.eq.s32.totalorder %s15, 3
      %p32 = por %p30, %p31
      %p33 = scmp.ne.s32.totalorder %s25, %s28
      %p34 = scmp.eq.s32.totalorder %s15, 0
      %p35 = por %p33, %p34
      %p36 = scmp.ne.s32.totalorder %s25, %s28
      %p37 = scmp.eq.s32.totalorder %s20, 3
      %p38 = por %p36, %p37
      %p39 = scmp.ne.s32.totalorder %s28, %s29
      %p40 = scmp.eq.s32.totalorder %s20, 0
      %p41 = por %p39, %p40
      %p42 = scmp.ne.s32.totalorder %s28, %s29
      %p43 = scmp.eq.s32.totalorder %s21, 3
      %p44 = por %p42, %p43
      %p46 = scmp.ne.s32.totalorder %s29, %s45
      %p47 = scmp.eq.s32.totalorder %s21, 0
      %p48 = por %p46, %p47
      %s50 = sadd.s32 %s49, 1
      %p53 = scmp.eq.s32.totalorder %s15, 3
      %p54 = scmp.ne.s32.totalorder %s49, %s51
      %p55 = scmp.eq.s32.totalorder %s15, 0
      %p56 = por %p54, %p55
      %p57 = scmp.ne.s32.totalorder %s49, %s51
      %p58 = scmp.eq.s32.totalorder %s20, 3
      %p59 = por %p57, %p58
      %p60 = scmp.ne.s32.totalorder %s51, %s52
      %p61 = scmp.eq.s32.totalorder %s20, 0
      %p62 = por %p60, %p61
      %p63 = scmp.ne.s32.totalorder %s51, %s52
      %p64 = scmp.eq.s32.totalorder %s21, 3
      %p65 = por %p63, %p64
      %p67 = scmp.ne.s32.totalorder %s52, %s66
      %p68 = scmp.eq.s32.totalorder %s21, 0
      %p69 = por %p67, %p68
      %s70 = ssub.s32 %s15, %s22
      %p71 = scmp.eq.s32.totalorder %s70, 0
      %s73 = sadd.s32 %s72, 1
      %s74 = scalar_select %p71, %s72, %s73
      %p77 = pneg %p71
      %p78 = scmp.eq.s32.totalorder %s15, 3
      %p79 = por %p77, %p78
      %p80 = scmp.ne.s32.totalorder %s72, %s75
      %p81 = scmp.eq.s32.totalorder %s15, 0
      %p82 = por %p80, %p81
      %p83 = scmp.ne.s32.totalorder %s72, %s75
      %p84 = scmp.eq.s32.totalorder %s20, 3
      %p85 = por %p83, %p84
      %p86 = scmp.ne.s32.totalorder %s75, %s76
      %p87 = scmp.eq.s32.totalorder %s20, 0
      %p88 = por %p86, %p87
      %p89 = scmp.ne.s32.totalorder %s75, %s76
      %p90 = scmp.eq.s32.totalorder %s21, 3
      %p91 = por %p89, %p90
      %p93 = scmp.ne.s32.totalorder %s76, %s92
      %p94 = scmp.eq.s32.totalorder %s21, 0
      %p95 = por %p93, %p94
      %p96 = scmp.le.s32.totalorder 1, %s15
      %p97 = scmp.lt.s32.totalorder %s15, 5
      %p98 = pnand %p96, %p97
      %p99 = pneg %p98
      // Predicated region
      $region9: #{tpu_custom_call.1} parent=5 // pred_check
        _
      $region10: #{tpu_custom_call.1} parent=5 // pred_check_branch
        %101 = sbr.rel (%p98) target = $region12
      $region11: #{tpu_custom_call.1} parent=5 // pred_region
        %s102 = ssub.s32 %s15, 1
        // Predicated region
        $region13: #{tpu_custom_call.1} parent=11 // pred_check
          %p103 = pneg %p62
        $region14: #{tpu_custom_call.1} parent=11 // pred_check_branch
          %105 = sbr.rel (%p103) target = $region16
        $region15: #{tpu_custom_call.1} parent=11 // pred_region
          %s107 = ssub.s32 18176, 18176
          %108 = vsyncadd [#allocation6], %s107
          %s109 = sshll.u32 [#allocation5], 4
          %s110 = int_to_ptr.vmem [resolvable:$true] %s109
          %115 = dma.hbm_to_vmem [thread:$0]  %s1, 18176, %s110, [#allocation6], 256, 256, 16
        $region16: #{tpu_custom_call.1} parent=11 // pred_fallthru
          _
      $region12: #{tpu_custom_call.1} parent=5 // pred_fallthru
        _
      %p116 = scmp.lt.s32.totalorder %s15, 4
      // Predicated region
      $region17: #{tpu_custom_call.1} parent=5 // pred_check
        %p117 = pneg %p116
      $region18: #{tpu_custom_call.1} parent=5 // pred_check_branch
        %119 = sbr.rel (%p117) target = $region20
      $region19: #{tpu_custom_call.1} parent=5 // pred_region
        // Predicated region
        $region21: #{tpu_custom_call.1} parent=19 // pred_check
          %p120 = pneg %p35
        $region22: #{tpu_custom_call.1} parent=19 // pred_check_branch
          %122 = sbr.rel (%p120) target = $region24
        $region23: #{tpu_custom_call.1} parent=19 // pred_region
          %s123 = sand.u32 %s25, 1
          %s124 = scalar_lea.sflag [#allocation3], %s123
          %s125 = sand.u32 %s25, 1
          %s126 = smul.addr %s125, 4
          %s127 = scalar_lea.vmem [#allocation2], %s126
          %s128 = smul.u32 2, %s15
          %s130 = ssub.s32 64, 64
          %131 = vsyncadd %s124, %s130
          %s132 = smul.addr %s128, 32
          %s133 = scalar_lea.hbm %s0, %s132
          %s135 = sshll.u32 %s127, 4
          %s136 = int_to_ptr.vmem [resolvable:$true] %s135
          %138 = dma.hbm_to_vmem [thread:$0]  %s133, 64, %s136, %s124
        $region24: #{tpu_custom_call.1} parent=19 // pred_fallthru
          _
      $region20: #{tpu_custom_call.1} parent=5 // pred_fallthru
        _
      %p139 = scmp.le.s32.totalorder 1, %s15
      %p140 = scmp.lt.s32.totalorder %s15, 5
      %p141 = pnand %p139, %p140
      %p142 = pneg %p141
      // Predicated region
      $region25: #{tpu_custom_call.1} parent=5 // pred_check
        _
      $region26: #{tpu_custom_call.1} parent=5 // pred_check_branch
        %144 = sbr.rel (%p141) target = $region28
      $region27: #{tpu_custom_call.1} parent=5 // pred_region
        %s145 = ssub.s32 %s15, 1
        %s146 = sand.u32 %s28, 1
        %s147 = scalar_lea.sflag [#allocation3], %s146
        %s148 = sand.u32 %s28, 1
        %s149 = smul.addr %s148, 4
        %s150 = scalar_lea.vmem [#allocation2], %s149
        // Predicated region
        $region29: #{tpu_custom_call.1} parent=27 // pred_check
          %p151 = pneg %p41
        $region30: #{tpu_custom_call.1} parent=27 // pred_check_branch
          %153 = sbr.rel (%p151) target = $region32
        $region31: #{tpu_custom_call.1} parent=27 // pred_region
          %154 = dma.done %s147, 64
        $region32: #{tpu_custom_call.1} parent=27 // pred_fallthru
          _
        // Predicated region
        $region33: #{tpu_custom_call.1} parent=27 // pred_check
          %p155 = pneg %p62
        $region34: #{tpu_custom_call.1} parent=27 // pred_check_branch
          %157 = sbr.rel (%p155) target = $region36
        $region35: #{tpu_custom_call.1} parent=27 // pred_region
          %158 = dma.done [#allocation6], 18176
        $region36: #{tpu_custom_call.1} parent=27 // pred_fallthru
          _
        %s159 = sand.u32 %s28, 1
        %s160 = scalar_lea.sflag [#allocation3], %s159
        %s161 = sand.u32 %s28, 1
        %s162 = smul.addr %s161, 4
        %s163 = scalar_lea.vmem [#allocation2], %s162
        %p164 = pneg %p41
        %p165 = pneg %p38
        %p166 = pneg %p62
        %p167 = pneg %p59
        %p168 = pneg %p88
        %p169 = pneg %p85
        %s170 = sand.u32 %s75, 1
        %s171 = scalar_lea.sflag [#allocation4], %s170
        %s172 = sand.u32 %s75, 1
        %s173 = smul.addr %s172, 2
        %s174 = scalar_lea.vmem [#allocation7], %s173
        %s175 = smul.u32 2, %s20
        %s176 = smul.u32 2, %s20
        %v177 = vld [vmem:[%s150] ss:$2 sm:$0x3]
        %s178 = scalar_lea.vmem %s150, 1 [#allocation2]
        %v179 = vld [vmem:[%s178] ss:$2 sm:$0x3]
        %v180 = vld [vmem:[#allocation5] sm:$0xff]
        %v181 = vld [vmem:[#allocation5 + $0x8] sm:$0xff]
        %v182 = vld [vmem:[#allocation5 + $0x10] sm:$0xff]
        %v183 = vld [vmem:[#allocation5 + $0x18] sm:$0xff]
        %v184 = vld [vmem:[#allocation5 + $0x20] sm:$0xff]
        %v185 = vld [vmem:[#allocation5 + $0x28] sm:$0xff]
        %v186 = vld [vmem:[#allocation5 + $0x30] sm:$0xff]
        %v187 = vld [vmem:[#allocation5 + $0x38] sm:$0xff]
        %v188 = vld [vmem:[#allocation5 + $0x40] sm:$0xff]
        %v189 = vld [vmem:[#allocation5 + $0x48] sm:$0xff]
        %v190 = vld [vmem:[#allocation5 + $0x50] sm:$0xff]
        %v191 = vld [vmem:[#allocation5 + $0x58] sm:$0xff]
        %v192 = vld [vmem:[#allocation5 + $0x60] sm:$0xff]
        %v193 = vld [vmem:[#allocation5 + $0x68] sm:$0xff]
        %v195 = vlaneseq
        %v196 = vshrl.u32 %v195, 7
        %v197 = vsub.s32 0, %v196
        %v198 = vrot.slane %v177, %v197
        %v199 = vlaneseq
        %v200 = vshrl.u32 %v199, 7
        %v201 = vsub.s32 1, %v200
        %v202 = vrot.slane %v177, %v201
        %v205 = vmul.f32 %v180, %v198
        %v206 = vmul.f32 %v181, %v202
        %v207 = vmul.f32 %v182, %v198
        %v208 = vmul.f32 %v183, %v202
        %v209 = vmul.f32 %v184, %v198
        %v210 = vmul.f32 %v185, %v202
        %v211 = vmul.f32 %v186, %v198
        %v212 = vmul.f32 %v187, %v202
        %v213 = vmul.f32 %v188, %v198
        %v214 = vmul.f32 %v189, %v202
        %v215 = vmul.f32 %v190, %v198
        %v216 = vmul.f32 %v191, %v202
        %v217 = vmul.f32 %v192, %v198
        %v218 = vmul.f32 %v193, %v202
        %v219 = vld [vmem:[#allocation5 + $0x150] sm:$0xff]
        %v220 = vld [vmem:[#allocation5 + $0x158] sm:$0xff]
        %v221 = vld [vmem:[#allocation5 + $0x160] sm:$0xff]
        %v222 = vld [vmem:[#allocation5 + $0x168] sm:$0xff]
        %v223 = vld [vmem:[#allocation5 + $0x170] sm:$0xff]
        %v224 = vld [vmem:[#allocation5 + $0x178] sm:$0xff]
        %v225 = vld [vmem:[#allocation5 + $0x180] sm:$0xff]
        %v226 = vld [vmem:[#allocation5 + $0x188] sm:$0xff]
        %v227 = vld [vmem:[#allocation5 + $0x190] sm:$0xff]
        %v228 = vld [vmem:[#allocation5 + $0x198] sm:$0xff]
        %v229 = vld [vmem:[#allocation5 + $0x1a0] sm:$0xff]
        %v230 = vld [vmem:[#allocation5 + $0x1a8] sm:$0xff]
        %v231 = vld [vmem:[#allocation5 + $0x1b0] sm:$0xff]
        %v232 = vld [vmem:[#allocation5 + $0x1b8] sm:$0xff]
        %v234 = vlaneseq
        %v235 = vshrl.u32 %v234, 7
        %v236 = vsub.s32 0, %v235
        %v237 = vrot.slane %v179, %v236
        %v238 = vlaneseq
        %v239 = vshrl.u32 %v238, 7
        %v240 = vsub.s32 1, %v239
        %v241 = vrot.slane %v179, %v240
        %v244 = vmul.f32 %v219, %v237
        %v245 = vmul.f32 %v220, %v241
        %v246 = vmul.f32 %v221, %v237
        %v247 = vmul.f32 %v222, %v241
        %v248 = vmul.f32 %v223, %v237
        %v249 = vmul.f32 %v224, %v241
        %v250 = vmul.f32 %v225, %v237
        %v251 = vmul.f32 %v226, %v241
        %v252 = vmul.f32 %v227, %v237
        %v253 = vmul.f32 %v228, %v241
        %v254 = vmul.f32 %v229, %v237
        %v255 = vmul.f32 %v230, %v241
        %v256 = vmul.f32 %v231, %v237
        %v257 = vmul.f32 %v232, %v241
        %v258 = vadd.f32 %v205, %v244
        %v259 = vadd.f32 %v206, %v245
        %v260 = vadd.f32 %v207, %v246
        %v261 = vadd.f32 %v208, %v247
        %v262 = vadd.f32 %v209, %v248
        %v263 = vadd.f32 %v210, %v249
        %v264 = vadd.f32 %v211, %v250
        %v265 = vadd.f32 %v212, %v251
        %v266 = vadd.f32 %v213, %v252
        %v267 = vadd.f32 %v214, %v253
        %v268 = vadd.f32 %v215, %v254
        %v269 = vadd.f32 %v216, %v255
        %v270 = vadd.f32 %v217, %v256
        %v271 = vadd.f32 %v218, %v257
        %v272 = vld [vmem:[#allocation5 + $0x2a0] sm:$0xff]
        %v273 = vld [vmem:[#allocation5 + $0x2a8] sm:$0xff]
        %v274 = vld [vmem:[#allocation5 + $0x2b0] sm:$0xff]
        %v275 = vld [vmem:[#allocation5 + $0x2b8] sm:$0xff]
        %v276 = vld [vmem:[#allocation5 + $0x2c0] sm:$0xff]
        %v277 = vld [vmem:[#allocation5 + $0x2c8] sm:$0xff]
        %v278 = vld [vmem:[#allocation5 + $0x2d0] sm:$0xff]
        %v279 = vld [vmem:[#allocation5 + $0x2d8] sm:$0xff]
        %v280 = vld [vmem:[#allocation5 + $0x2e0] sm:$0xff]
        %v281 = vld [vmem:[#allocation5 + $0x2e8] sm:$0xff]
        %v282 = vld [vmem:[#allocation5 + $0x2f0] sm:$0xff]
        %v283 = vld [vmem:[#allocation5 + $0x2f8] sm:$0xff]
        %v284 = vld [vmem:[#allocation5 + $0x300] sm:$0xff]
        %v285 = vld [vmem:[#allocation5 + $0x308] sm:$0xff]
        %v286 = vadd.f32 %v258, %v272
        %v287 = vadd.f32 %v259, %v273
        %v288 = vadd.f32 %v260, %v274
        %v289 = vadd.f32 %v261, %v275
        %v290 = vadd.f32 %v262, %v276
        %v291 = vadd.f32 %v263, %v277
        %v292 = vadd.f32 %v264, %v278
        %v293 = vadd.f32 %v265, %v279
        %v294 = vadd.f32 %v266, %v280
        %v295 = vadd.f32 %v267, %v281
        %v296 = vadd.f32 %v268, %v282
        %v297 = vadd.f32 %v269, %v283
        %v298 = vadd.f32 %v270, %v284
        %v299 = vadd.f32 %v271, %v285
        %v300 = vmul.f32 %v286, 0.5
        %v301 = vmul.f32 %v287, 0.5
        %v302 = vmul.f32 %v288, 0.5
        %v303 = vmul.f32 %v289, 0.5
        %v304 = vmul.f32 %v290, 0.5
        %v305 = vmul.f32 %v291, 0.5
        %v306 = vmul.f32 %v292, 0.5
        %v307 = vmul.f32 %v293, 0.5
        %v308 = vmul.f32 %v294, 0.5
        %v309 = vmul.f32 %v295, 0.5
        %v310 = vmul.f32 %v296, 0.5
        %v311 = vmul.f32 %v297, 0.5
        %v312 = vmul.f32 %v298, 0.5
        %v313 = vmul.f32 %v299, 0.5
        %v314 = vtanh.pop %v300
        %v315 = vtanh.pop %v301
        %v316 = vtanh.pop %v302
        %v317 = vtanh.pop %v303
        %v318 = vtanh.pop %v304
        %v319 = vtanh.pop %v305
        %v320 = vtanh.pop %v306
        %v321 = vtanh.pop %v307
        %v322 = vtanh.pop %v308
        %v323 = vtanh.pop %v309
        %v324 = vtanh.pop %v310
        %v325 = vtanh.pop %v311
        %v326 = vtanh.pop %v312
        %v327 = vtanh.pop %v313
        %v328 = vadd.f32 %v314, 1.0
        %v329 = vadd.f32 %v315, 1.0
        %v330 = vadd.f32 %v316, 1.0
        %v331 = vadd.f32 %v317, 1.0
        %v332 = vadd.f32 %v318, 1.0
        %v333 = vadd.f32 %v319, 1.0
        %v334 = vadd.f32 %v320, 1.0
        %v335 = vadd.f32 %v321, 1.0
        %v336 = vadd.f32 %v322, 1.0
        %v337 = vadd.f32 %v323, 1.0
        %v338 = vadd.f32 %v324, 1.0
        %v339 = vadd.f32 %v325, 1.0
        %v340 = vadd.f32 %v326, 1.0
        %v341 = vadd.f32 %v327, 1.0
        %v342 = vmul.f32 %v328, 0.5
        %v343 = vmul.f32 %v329, 0.5
        %v344 = vmul.f32 %v330, 0.5
        %v345 = vmul.f32 %v331, 0.5
        %v346 = vmul.f32 %v332, 0.5
        %v347 = vmul.f32 %v333, 0.5
        %v348 = vmul.f32 %v334, 0.5
        %v349 = vmul.f32 %v335, 0.5
        %v350 = vmul.f32 %v336, 0.5
        %v351 = vmul.f32 %v337, 0.5
        %v352 = vmul.f32 %v338, 0.5
        %v353 = vmul.f32 %v339, 0.5
        %v354 = vmul.f32 %v340, 0.5
        %v355 = vmul.f32 %v341, 0.5
        %v356 = vld [vmem:[#allocation5 + $0xe0] sm:$0xff]
        %v357 = vld [vmem:[#allocation5 + $0xe8] sm:$0xff]
        %v358 = vld [vmem:[#allocation5 + $0xf0] sm:$0xff]
        %v359 = vld [vmem:[#allocation5 + $0xf8] sm:$0xff]
        %v360 = vld [vmem:[#allocation5 + $0x100] sm:$0xff]
        %v361 = vld [vmem:[#allocation5 + $0x108] sm:$0xff]
        %v362 = vld [vmem:[#allocation5 + $0x110] sm:$0xff]
        %v363 = vld [vmem:[#allocation5 + $0x118] sm:$0xff]
        %v364 = vld [vmem:[#allocation5 + $0x120] sm:$0xff]
        %v365 = vld [vmem:[#allocation5 + $0x128] sm:$0xff]
        %v366 = vld [vmem:[#allocation5 + $0x130] sm:$0xff]
        %v367 = vld [vmem:[#allocation5 + $0x138] sm:$0xff]
        %v368 = vld [vmem:[#allocation5 + $0x140] sm:$0xff]
        %v369 = vld [vmem:[#allocation5 + $0x148] sm:$0xff]
        %v370 = vmul.f32 %v356, %v198
        %v371 = vmul.f32 %v357, %v202
        %v372 = vmul.f32 %v358, %v198
        %v373 = vmul.f32 %v359, %v202
        %v374 = vmul.f32 %v360, %v198
        %v375 = vmul.f32 %v361, %v202
        %v376 = vmul.f32 %v362, %v198
        %v377 = vmul.f32 %v363, %v202
        %v378 = vmul.f32 %v364, %v198
        %v379 = vmul.f32 %v365, %v202
        %v380 = vmul.f32 %v366, %v198
        %v381 = vmul.f32 %v367, %v202
        %v382 = vmul.f32 %v368, %v198
        %v383 = vmul.f32 %v369, %v202
        %v384 = vld [vmem:[#allocation5 + $0x230] sm:$0xff]
        %v385 = vld [vmem:[#allocation5 + $0x238] sm:$0xff]
        %v386 = vld [vmem:[#allocation5 + $0x240] sm:$0xff]
        %v387 = vld [vmem:[#allocation5 + $0x248] sm:$0xff]
        %v388 = vld [vmem:[#allocation5 + $0x250] sm:$0xff]
        %v389 = vld [vmem:[#allocation5 + $0x258] sm:$0xff]
        %v390 = vld [vmem:[#allocation5 + $0x260] sm:$0xff]
        %v391 = vld [vmem:[#allocation5 + $0x268] sm:$0xff]
        %v392 = vld [vmem:[#allocation5 + $0x270] sm:$0xff]
        %v393 = vld [vmem:[#allocation5 + $0x278] sm:$0xff]
        %v394 = vld [vmem:[#allocation5 + $0x280] sm:$0xff]
        %v395 = vld [vmem:[#allocation5 + $0x288] sm:$0xff]
        %v396 = vld [vmem:[#allocation5 + $0x290] sm:$0xff]
        %v397 = vld [vmem:[#allocation5 + $0x298] sm:$0xff]
        %v398 = vmul.f32 %v384, %v237
        %v399 = vmul.f32 %v385, %v241
        %v400 = vmul.f32 %v386, %v237
        %v401 = vmul.f32 %v387, %v241
        %v402 = vmul.f32 %v388, %v237
        %v403 = vmul.f32 %v389, %v241
        %v404 = vmul.f32 %v390, %v237
        %v405 = vmul.f32 %v391, %v241
        %v406 = vmul.f32 %v392, %v237
        %v407 = vmul.f32 %v393, %v241
        %v408 = vmul.f32 %v394, %v237
        %v409 = vmul.f32 %v395, %v241
        %v410 = vmul.f32 %v396, %v237
        %v411 = vmul.f32 %v397, %v241
        %v412 = vadd.f32 %v370, %v398
        %v413 = vadd.f32 %v371, %v399
        %v414 = vadd.f32 %v372, %v400
        %v415 = vadd.f32 %v373, %v401
        %v416 = vadd.f32 %v374, %v402
        %v417 = vadd.f32 %v375, %v403
        %v418 = vadd.f32 %v376, %v404
        %v419 = vadd.f32 %v377, %v405
        %v420 = vadd.f32 %v378, %v406
        %v421 = vadd.f32 %v379, %v407
        %v422 = vadd.f32 %v380, %v408
        %v423 = vadd.f32 %v381, %v409
        %v424 = vadd.f32 %v382, %v410
        %v425 = vadd.f32 %v383, %v411
        %v426 = vld [vmem:[#allocation5 + $0x380] sm:$0xff]
        %v427 = vld [vmem:[#allocation5 + $0x388] sm:$0xff]
        %v428 = vld [vmem:[#allocation5 + $0x390] sm:$0xff]
        %v429 = vld [vmem:[#allocation5 + $0x398] sm:$0xff]
        %v430 = vld [vmem:[#allocation5 + $0x3a0] sm:$0xff]
        %v431 = vld [vmem:[#allocation5 + $0x3a8] sm:$0xff]
        %v432 = vld [vmem:[#allocation5 + $0x3b0] sm:$0xff]
        %v433 = vld [vmem:[#allocation5 + $0x3b8] sm:$0xff]
        %v434 = vld [vmem:[#allocation5 + $0x3c0] sm:$0xff]
        %v435 = vld [vmem:[#allocation5 + $0x3c8] sm:$0xff]
        %v436 = vld [vmem:[#allocation5 + $0x3d0] sm:$0xff]
        %v437 = vld [vmem:[#allocation5 + $0x3d8] sm:$0xff]
        %v438 = vld [vmem:[#allocation5 + $0x3e0] sm:$0xff]
        %v439 = vld [vmem:[#allocation5 + $0x3e8] sm:$0xff]
        %v440 = vadd.f32 %v412, %v426
        %v441 = vadd.f32 %v413, %v427
        %v442 = vadd.f32 %v414, %v428
        %v443 = vadd.f32 %v415, %v429
        %v444 = vadd.f32 %v416, %v430
        %v445 = vadd.f32 %v417, %v431
        %v446 = vadd.f32 %v418, %v432
        %v447 = vadd.f32 %v419, %v433
        %v448 = vadd.f32 %v420, %v434
        %v449 = vadd.f32 %v421, %v435
        %v450 = vadd.f32 %v422, %v436
        %v451 = vadd.f32 %v423, %v437
        %v452 = vadd.f32 %v424, %v438
        %v453 = vadd.f32 %v425, %v439
        %v454 = vtanh.pop %v440
        %v455 = vtanh.pop %v441
        %v456 = vtanh.pop %v442
        %v457 = vtanh.pop %v443
        %v458 = vtanh.pop %v444
        %v459 = vtanh.pop %v445
        %v460 = vtanh.pop %v446
        %v461 = vtanh.pop %v447
        %v462 = vtanh.pop %v448
        %v463 = vtanh.pop %v449
        %v464 = vtanh.pop %v450
        %v465 = vtanh.pop %v451
        %v466 = vtanh.pop %v452
        %v467 = vtanh.pop %v453
        %v468 = vmul.f32 %v342, %v454
        %v469 = vmul.f32 %v343, %v455
        %v470 = vmul.f32 %v344, %v456
        %v471 = vmul.f32 %v345, %v457
        %v472 = vmul.f32 %v346, %v458
        %v473 = vmul.f32 %v347, %v459
        %v474 = vmul.f32 %v348, %v460
        %v475 = vmul.f32 %v349, %v461
        %v476 = vmul.f32 %v350, %v462
        %v477 = vmul.f32 %v351, %v463
        %v478 = vmul.f32 %v352, %v464
        %v479 = vmul.f32 %v353, %v465
        %v480 = vmul.f32 %v354, %v466
        %v481 = vmul.f32 %v355, %v467
        %v482 = vtanh.pop %v468
        %v483 = vtanh.pop %v469
        %v484 = vtanh.pop %v470
        %v485 = vtanh.pop %v471
        %v486 = vtanh.pop %v472
        %v487 = vtanh.pop %v473
        %v488 = vtanh.pop %v474
        %v489 = vtanh.pop %v475
        %v490 = vtanh.pop %v476
        %v491 = vtanh.pop %v477
        %v492 = vtanh.pop %v478
        %v493 = vtanh.pop %v479
        %v494 = vtanh.pop %v480
        %v495 = vtanh.pop %v481
        %v496 = vld [vmem:[#allocation5 + $0x70] sm:$0xff]
        %v497 = vld [vmem:[#allocation5 + $0x78] sm:$0xff]
        %v498 = vld [vmem:[#allocation5 + $0x80] sm:$0xff]
        %v499 = vld [vmem:[#allocation5 + $0x88] sm:$0xff]
        %v500 = vld [vmem:[#allocation5 + $0x90] sm:$0xff]
        %v501 = vld [vmem:[#allocation5 + $0x98] sm:$0xff]
        %v502 = vld [vmem:[#allocation5 + $0xa0] sm:$0xff]
        %v503 = vld [vmem:[#allocation5 + $0xa8] sm:$0xff]
        %v504 = vld [vmem:[#allocation5 + $0xb0] sm:$0xff]
        %v505 = vld [vmem:[#allocation5 + $0xb8] sm:$0xff]
        %v506 = vld [vmem:[#allocation5 + $0xc0] sm:$0xff]
        %v507 = vld [vmem:[#allocation5 + $0xc8] sm:$0xff]
        %v508 = vld [vmem:[#allocation5 + $0xd0] sm:$0xff]
        %v509 = vld [vmem:[#allocation5 + $0xd8] sm:$0xff]
        %v510 = vmul.f32 %v496, %v198
        %v511 = vmul.f32 %v497, %v202
        %v512 = vmul.f32 %v498, %v198
        %v513 = vmul.f32 %v499, %v202
        %v514 = vmul.f32 %v500, %v198
        %v515 = vmul.f32 %v501, %v202
        %v516 = vmul.f32 %v502, %v198
        %v517 = vmul.f32 %v503, %v202
        %v518 = vmul.f32 %v504, %v198
        %v519 = vmul.f32 %v505, %v202
        %v520 = vmul.f32 %v506, %v198
        %v521 = vmul.f32 %v507, %v202
        %v522 = vmul.f32 %v508, %v198
        %v523 = vmul.f32 %v509, %v202
        %v524 = vld [vmem:[#allocation5 + $0x1c0] sm:$0xff]
        %v525 = vld [vmem:[#allocation5 + $0x1c8] sm:$0xff]
        %v526 = vld [vmem:[#allocation5 + $0x1d0] sm:$0xff]
        %v527 = vld [vmem:[#allocation5 + $0x1d8] sm:$0xff]
        %v528 = vld [vmem:[#allocation5 + $0x1e0] sm:$0xff]
        %v529 = vld [vmem:[#allocation5 + $0x1e8] sm:$0xff]
        %v530 = vld [vmem:[#allocation5 + $0x1f0] sm:$0xff]
        %v531 = vld [vmem:[#allocation5 + $0x1f8] sm:$0xff]
        %v532 = vld [vmem:[#allocation5 + $0x200] sm:$0xff]
        %v533 = vld [vmem:[#allocation5 + $0x208] sm:$0xff]
        %v534 = vld [vmem:[#allocation5 + $0x210] sm:$0xff]
        %v535 = vld [vmem:[#allocation5 + $0x218] sm:$0xff]
        %v536 = vld [vmem:[#allocation5 + $0x220] sm:$0xff]
        %v537 = vld [vmem:[#allocation5 + $0x228] sm:$0xff]
        %v538 = vmul.f32 %v524, %v237
        %v539 = vmul.f32 %v525, %v241
        %v540 = vmul.f32 %v526, %v237
        %v541 = vmul.f32 %v527, %v241
        %v542 = vmul.f32 %v528, %v237
        %v543 = vmul.f32 %v529, %v241
        %v544 = vmul.f32 %v530, %v237
        %v545 = vmul.f32 %v531, %v241
        %v546 = vmul.f32 %v532, %v237
        %v547 = vmul.f32 %v533, %v241
        %v548 = vmul.f32 %v534, %v237
        %v549 = vmul.f32 %v535, %v241
        %v550 = vmul.f32 %v536, %v237
        %v551 = vmul.f32 %v537, %v241
        %v552 = vadd.f32 %v510, %v538
        %v553 = vadd.f32 %v511, %v539
        %v554 = vadd.f32 %v512, %v540
        %v555 = vadd.f32 %v513, %v541
        %v556 = vadd.f32 %v514, %v542
        %v557 = vadd.f32 %v515, %v543
        %v558 = vadd.f32 %v516, %v544
        %v559 = vadd.f32 %v517, %v545
        %v560 = vadd.f32 %v518, %v546
        %v561 = vadd.f32 %v519, %v547
        %v562 = vadd.f32 %v520, %v548
        %v563 = vadd.f32 %v521, %v549
        %v564 = vadd.f32 %v522, %v550
        %v565 = vadd.f32 %v523, %v551
        %v566 = vld [vmem:[#allocation5 + $0x310] sm:$0xff]
        %v567 = vld [vmem:[#allocation5 + $0x318] sm:$0xff]
        %v568 = vld [vmem:[#allocation5 + $0x320] sm:$0xff]
        %v569 = vld [vmem:[#allocation5 + $0x328] sm:$0xff]
        %v570 = vld [vmem:[#allocation5 + $0x330] sm:$0xff]
        %v571 = vld [vmem:[#allocation5 + $0x338] sm:$0xff]
        %v572 = vld [vmem:[#allocation5 + $0x340] sm:$0xff]
        %v573 = vld [vmem:[#allocation5 + $0x348] sm:$0xff]
        %v574 = vld [vmem:[#allocation5 + $0x350] sm:$0xff]
        %v575 = vld [vmem:[#allocation5 + $0x358] sm:$0xff]
        %v576 = vld [vmem:[#allocation5 + $0x360] sm:$0xff]
        %v577 = vld [vmem:[#allocation5 + $0x368] sm:$0xff]
        %v578 = vld [vmem:[#allocation5 + $0x370] sm:$0xff]
        %v579 = vld [vmem:[#allocation5 + $0x378] sm:$0xff]
        %v580 = vadd.f32 %v552, %v566
        %v581 = vadd.f32 %v553, %v567
        %v582 = vadd.f32 %v554, %v568
        %v583 = vadd.f32 %v555, %v569
        %v584 = vadd.f32 %v556, %v570
        %v585 = vadd.f32 %v557, %v571
        %v586 = vadd.f32 %v558, %v572
        %v587 = vadd.f32 %v559, %v573
        %v588 = vadd.f32 %v560, %v574
        %v589 = vadd.f32 %v561, %v575
        %v590 = vadd.f32 %v562, %v576
        %v591 = vadd.f32 %v563, %v577
        %v592 = vadd.f32 %v564, %v578
        %v593 = vadd.f32 %v565, %v579
        %v594 = vmul.f32 %v580, 0.5
        %v595 = vmul.f32 %v581, 0.5
        %v596 = vmul.f32 %v582, 0.5
        %v597 = vmul.f32 %v583, 0.5
        %v598 = vmul.f32 %v584, 0.5
        %v599 = vmul.f32 %v585, 0.5
        %v600 = vmul.f32 %v586, 0.5
        %v601 = vmul.f32 %v587, 0.5
        %v602 = vmul.f32 %v588, 0.5
        %v603 = vmul.f32 %v589, 0.5
        %v604 = vmul.f32 %v590, 0.5
        %v605 = vmul.f32 %v591, 0.5
        %v606 = vmul.f32 %v592, 0.5
        %v607 = vmul.f32 %v593, 0.5
        %v608 = vtanh.pop %v594
        %v609 = vtanh.pop %v595
        %v610 = vtanh.pop %v596
        %v611 = vtanh.pop %v597
        %v612 = vtanh.pop %v598
        %v613 = vtanh.pop %v599
        %v614 = vtanh.pop %v600
        %v615 = vtanh.pop %v601
        %v616 = vtanh.pop %v602
        %v617 = vtanh.pop %v603
        %v618 = vtanh.pop %v604
        %v619 = vtanh.pop %v605
        %v620 = vtanh.pop %v606
        %v621 = vtanh.pop %v607
        %v622 = vadd.f32 %v608, 1.0
        %v623 = vadd.f32 %v609, 1.0
        %v624 = vadd.f32 %v610, 1.0
        %v625 = vadd.f32 %v611, 1.0
        %v626 = vadd.f32 %v612, 1.0
        %v627 = vadd.f32 %v613, 1.0
        %v628 = vadd.f32 %v614, 1.0
        %v629 = vadd.f32 %v615, 1.0
        %v630 = vadd.f32 %v616, 1.0
        %v631 = vadd.f32 %v617, 1.0
        %v632 = vadd.f32 %v618, 1.0
        %v633 = vadd.f32 %v619, 1.0
        %v634 = vadd.f32 %v620, 1.0
        %v635 = vadd.f32 %v621, 1.0
        %v636 = vmul.f32 %v622, 0.5
        %v637 = vmul.f32 %v623, 0.5
        %v638 = vmul.f32 %v624, 0.5
        %v639 = vmul.f32 %v625, 0.5
        %v640 = vmul.f32 %v626, 0.5
        %v641 = vmul.f32 %v627, 0.5
        %v642 = vmul.f32 %v628, 0.5
        %v643 = vmul.f32 %v629, 0.5
        %v644 = vmul.f32 %v630, 0.5
        %v645 = vmul.f32 %v631, 0.5
        %v646 = vmul.f32 %v632, 0.5
        %v647 = vmul.f32 %v633, 0.5
        %v648 = vmul.f32 %v634, 0.5
        %v649 = vmul.f32 %v635, 0.5
        %v650 = vmul.f32 %v636, %v482
        %v651 = vmul.f32 %v637, %v483
        %v652 = vmul.f32 %v638, %v484
        %v653 = vmul.f32 %v639, %v485
        %v654 = vmul.f32 %v640, %v486
        %v655 = vmul.f32 %v641, %v487
        %v656 = vmul.f32 %v642, %v488
        %v657 = vmul.f32 %v643, %v489
        %v658 = vmul.f32 %v644, %v490
        %v659 = vmul.f32 %v645, %v491
        %v660 = vmul.f32 %v646, %v492
        %v661 = vmul.f32 %v647, %v493
        %v662 = vmul.f32 %v648, %v494
        %v663 = vmul.f32 %v649, %v495
        %v664 = vld [vmem:[#allocation5 + $0x3f0] sm:$0xff]
        %v665 = vld [vmem:[#allocation5 + $0x3f8] sm:$0xff]
        %v666 = vld [vmem:[#allocation5 + $0x400] sm:$0xff]
        %v667 = vld [vmem:[#allocation5 + $0x408] sm:$0xff]
        %v668 = vld [vmem:[#allocation5 + $0x410] sm:$0xff]
        %v669 = vld [vmem:[#allocation5 + $0x418] sm:$0xff]
        %v670 = vld [vmem:[#allocation5 + $0x420] sm:$0xff]
        %v671 = vld [vmem:[#allocation5 + $0x428] sm:$0xff]
        %v672 = vld [vmem:[#allocation5 + $0x430] sm:$0xff]
        %v673 = vld [vmem:[#allocation5 + $0x438] sm:$0xff]
        %v674 = vld [vmem:[#allocation5 + $0x440] sm:$0xff]
        %v675 = vld [vmem:[#allocation5 + $0x448] sm:$0xff]
        %v676 = vld [vmem:[#allocation5 + $0x450] sm:$0xff]
        %v677 = vld [vmem:[#allocation5 + $0x458] sm:$0xff]
        %s678 = scalar_lea.vmem [#allocation5], 1120
        %v679 = vld [vmem:[%s678] ss:$8 sm:$0x3]
        %v680 = vmul.f32 %v664, %v650
        %v681 = vmul.f32 %v665, %v651
        %v682 = vmul.f32 %v666, %v652
        %v683 = vmul.f32 %v667, %v653
        %v684 = vmul.f32 %v668, %v654
        %v685 = vmul.f32 %v669, %v655
        %v686 = vmul.f32 %v670, %v656
        %v687 = vmul.f32 %v671, %v657
        %v688 = vmul.f32 %v672, %v658
        %v689 = vmul.f32 %v673, %v659
        %v690 = vmul.f32 %v674, %v660
        %v691 = vmul.f32 %v675, %v661
        %v692 = vmul.f32 %v676, %v662
        %v693 = vmul.f32 %v677, %v663
        %v694 = vadd.f32 %v680, %v682
        %v695 = vadd.f32 %v694, %v684
        %v696 = vadd.f32 %v695, %v686
        %v697 = vadd.f32 %v696, %v688
        %v698 = vadd.f32 %v697, %v690
        %v699 = vadd.f32 %v698, %v692
        %v700 = vrot.slane %v699, 4
        %v701 = vadd.f32 %v699, %v700
        %v702 = vrot.slane %v701, 2
        %v703 = vadd.f32 %v701, %v702
        %v704 = vrot.slane %v703, 1
        %v705 = vadd.f32 %v703, %v704
        %v706 = vadd.f32 %v681, %v683
        %v707 = vadd.f32 %v706, %v685
        %v708 = vadd.f32 %v707, %v687
        %v709 = vadd.f32 %v708, %v689
        %v710 = vadd.f32 %v709, %v691
        %v711 = vadd.f32 %v710, %v693
        %v712 = vrot.slane %v711, 4
        %v713 = vadd.f32 %v711, %v712
        %v714 = vrot.slane %v713, 2
        %v715 = vadd.f32 %v713, %v714
        %v716 = vrot.slane %v715, 1
        %v717 = vadd.f32 %v715, %v716
        %v719 = vlaneseq
        %v720 = vshrl.u32 %v719, 7
        %v721 = vsub.s32 0, %v720
        %v722 = vrot.slane %v679, %v721
        %v723 = vlaneseq
        %v724 = vshrl.u32 %v723, 7
        %v725 = vsub.s32 1, %v724
        %v726 = vrot.slane %v679, %v725
        %v729 = vadd.f32 %v705, %v722
        %v730 = vadd.f32 %v717, %v726
        %v733 = vcombine.low %v729, %v730
        %v735 = vunpack.c.l.s4 1966171168
        %v736 = vunpack.c.0.s8 %v735
        %v737 = vlaneseq
        %v738 = vshrl.u32 %v737, 7
        %v739 = vsub.s32 %v736, %v738
        %v740 = vrot.slane %v733, %v739
        %v742 = vunpack.c.l.s4 1966171168
        %v743 = vunpack.c.0.s8 %v742
        %v744 = vlaneseq
        %v745 = vshrl.u32 %v744, 7
        %v746 = vsub.s32 %v743, %v745
        %v747 = vrot.slane %v740, %v746
        %v749 = vlaneseq
        %vm750 = vcmp.ge.s32.totalorder %v749, 0
        %vm751 = vcmp.lt.s32.totalorder %v749, 256
        %vm752 = vmand %vm750, %vm751
        %753 = vst.msk [vmem:[%s174] sm:$0x3] %vm752, %v747
        %s754 = sand.u32 %s75, 1
        %s755 = scalar_lea.sflag [#allocation4], %s754
        %s756 = sand.u32 %s75, 1
        %s757 = smul.addr %s756, 2
        %s758 = scalar_lea.vmem [#allocation7], %s757
        // Predicated region
        $region37: #{tpu_custom_call.1} parent=27 // pred_check
          %p759 = pneg %p85
        $region38: #{tpu_custom_call.1} parent=27 // pred_check_branch
          %761 = sbr.rel (%p759) target = $region40
        $region39: #{tpu_custom_call.1} parent=27 // pred_region
          %s762 = smul.u32 2, %s20
          %s764 = ssub.s32 32, 32
          %765 = vsyncadd %s755, %s764
          %s766 = smul.addr %s762, 16
          %s767 = scalar_lea.hbm %s2, %s766
          %s769 = sshll.u32 %s758, 4
          %s770 = int_to_ptr.vmem [resolvable:$true] %s769
          %772 = dma.vmem_to_hbm [thread:$0]  %s770, 32, %s767, %s755
        $region40: #{tpu_custom_call.1} parent=27 // pred_fallthru
          _
      $region28: #{tpu_custom_call.1} parent=5 // pred_fallthru
        _
      %p773 = scmp.le.s32.totalorder 2, %s15
      // Predicated region
      $region41: #{tpu_custom_call.1} parent=5 // pred_check
        %p774 = pneg %p773
      $region42: #{tpu_custom_call.1} parent=5 // pred_check_branch
        %776 = sbr.rel (%p774) target = $region44
      $region43: #{tpu_custom_call.1} parent=5 // pred_region
        %s777 = ssub.s32 %s15, 2
        // Predicated region
        $region45: #{tpu_custom_call.1} parent=43 // pred_check
          %p778 = pneg %p91
        $region46: #{tpu_custom_call.1} parent=43 // pred_check_branch
          %780 = sbr.rel (%p778) target = $region48
        $region47: #{tpu_custom_call.1} parent=43 // pred_region
          %s781 = sand.u32 %s76, 1
          %s782 = scalar_lea.sflag [#allocation4], %s781
          %s783 = sand.u32 %s76, 1
          %s784 = smul.addr %s783, 2
          %s785 = scalar_lea.vmem [#allocation7], %s784
          %786 = dma.done %s782, 32
        $region48: #{tpu_custom_call.1} parent=43 // pred_fallthru
          _
      $region44: #{tpu_custom_call.1} parent=5 // pred_fallthru
        _
    $region6: #{tpu_custom_call.1} parent=1 // loop_footer
      %s19 = sadd.s32 1, %s15
    $region7: #{tpu_custom_call.1} parent=1 // loop_footer_branch
      %14 = sbr.rel target = $region3
    $region8: #{tpu_custom_call.1} parent=1 // loop_exit
      _
    %787 = vsyncpa [#allocation3], 1
    %s788 = scalar_lea.sflag [#allocation3], 1
    %789 = vsyncpa %s788, 1
    %790 = vsyncpa [#allocation6], 1
    %791 = vsyncpa [#allocation4], 1
    %s792 = scalar_lea.sflag [#allocation4], 1
    %793 = vsyncpa %s792, 1

</llo_original>
